<compile_context>
chip_gen: v7x
topology: tpu7x:2x2x1
jax: 0.10.0
libtpu: 0.0.40
codegen_flags: <defaults>
</compile_context>

<pallas_src>
import functools
import math

import jax
import jax.numpy as jnp
from jax.experimental import pallas as pl
from jax.experimental.pallas import tpu as pltpu


def _round_up(x, m):
    return ((x + m - 1) // m) * m


def _total_embedding_kernel(*refs, apply_dropout):
    if apply_dropout:
        ids_ref, pidx_ref, mask_ref, table_ref, out_ref = refs
    else:
        ids_ref, pidx_ref, table_ref, out_ref = refs
        mask_ref = None

    rows = out_ref.shape[0]
    K = table_ref.shape[0]

    # Two-hot row selector: one hit for the token row, one for the positional
    # row (positional rows live at offset V inside the combined table, and the
    # offset is already folded into pidx outside the kernel).  One MXU matmul
    # then yields tok_table[id] + pos_enc[pos].
    lane = jax.lax.broadcasted_iota(jnp.int32, (rows, K), 1)         # (rows, K)
    two_hot = jnp.logical_or(lane == ids_ref[...],                    # (rows,1) bcast
                             lane == pidx_ref[...]).astype(jnp.float32)
    emb = jnp.dot(two_hot, table_ref[...],
                  preferred_element_type=jnp.float32,
                  precision=jax.lax.Precision.HIGHEST)                # (rows, D)

    if apply_dropout:
        emb = emb * mask_ref[...]                                     # pre-scaled keep mask
    out_ref[...] = emb


def total_embedding(ids, tok_table, pos_enc, drop_prob, dropout_key=None,
                    row_block=256):
    """Pallas TPU implementation of TotalEmbedding.forward.

    ids:       (B, S) int32 token indices
    tok_table: (V, D) float32 embedding weight
    pos_enc:   (>=S, D) float32 sinusoidal positional encoding
    drop_prob: Python float in [0, 1]
    dropout_key: jax PRNG key (required iff drop_prob > 0)
    """
    if drop_prob < 0.0 or drop_prob > 1.0:
        raise ValueError("drop_prob must be in [0, 1]")
    apply_dropout = drop_prob > 0.0
    if apply_dropout and dropout_key is None:
        raise ValueError("dropout_key required when drop_prob > 0")

    B, S = ids.shape
    V, D = tok_table.shape
    pos_enc = pos_enc[:S]

    # Flatten (B, S) -> rows and pick a lane/sublane-friendly row tile.
    N = B * S
    row_block = max(8, min(row_block, _round_up(N, 8)))
    N_pad = _round_up(N, row_block)
    G = N_pad // row_block
    D_pad = _round_up(D, 128)
    K_pad = _round_up(V + S, 128)

    # Combined lookup table: token rows, then positional rows, zero padding.
    # (Out-of-range token ids select a zero row rather than erroring, unlike
    #  torch nn.Embedding.)
    table = jnp.zeros((K_pad, D_pad), jnp.float32)
    table = table.at[:V, :D].set(tok_table.astype(jnp.float32))
    table = table.at[V:V + S, :D].set(pos_enc.astype(jnp.float32))

    # Per-row index columns, shape (N_pad, 1) so the block (row_block, 1)
    # satisfies the (8, full) tiling constraint.
    ids_col = jnp.zeros((N_pad,), jnp.int32).at[:N].set(
        ids.reshape(N).astype(jnp.int32))[:, None]
    pos_col = jnp.full((N_pad,), V, jnp.int32).at[:N].set(
        V + jnp.tile(jnp.arange(S, dtype=jnp.int32), B))[:, None]

    in_specs = [
        pl.BlockSpec((row_block, 1), lambda i: (i, 0)),   # token ids
        pl.BlockSpec((row_block, 1), lambda i: (i, 0)),   # pos ids (offset by V)
    ]
    inputs = [ids_col, pos_col]

    if apply_dropout:
        keep_prob = 1.0 - drop_prob
        keep = jax.random.bernoulli(dropout_key, keep_prob, (N_pad, D_pad))
        scale = (1.0 / keep_prob) if keep_prob > 0.0 else 0.0   # p == 1 -> all-zero output
        mask = keep.astype(jnp.float32) * jnp.float32(scale)
        in_specs.append(pl.BlockSpec((row_block, D_pad), lambda i: (i, 0)))
        inputs.append(mask)

    # Combined table stays resident in VMEM (constant index map, small here).
    in_specs.append(pl.BlockSpec((K_pad, D_pad), lambda i: (0, 0)))
    inputs.append(table)

    kernel = functools.partial(_total_embedding_kernel,
                               apply_dropout=apply_dropout)

    out_pad = pl.pallas_call(
        kernel,
        out_shape=jax.ShapeDtypeStruct((N_pad, D_pad), jnp.float32),
        grid=(G,),
        in_specs=in_specs,
        out_specs=pl.BlockSpec((row_block, D_pad), lambda i: (i, 0)),
        compiler_params=pltpu.CompilerParams(
            dimension_semantics=("parallel",)),
    )(*inputs)

    return out_pad[:N, :D].reshape(B, S, D)


def sinusoidal_pos_encoding(maxlen, d_model):
    """Same buffer PositionEmbedding builds in __init__ (plain JAX glue)."""
    pos = jnp.arange(maxlen, dtype=jnp.float32)[:, None]                 # (L, 1)
    i = jnp.arange(0, d_model, 2, dtype=jnp.float32)                     # (D/2,)
    div = jnp.exp(-(math.log(10000.0) / d_model) * i)
    ang = pos * div                                                      # (L, D/2)
    pe = jnp.zeros((maxlen, d_model), jnp.float32)
    pe = pe.at[:, 0::2].set(jnp.sin(ang))
    pe = pe.at[:, 1::2].set(jnp.cos(ang))
    return pe


if __name__ == "__main__":
    vocab_size = 64
    d_model = 128
    maxlen = 16
    seq_len = 8
    batch = 2
    drop_prob = 0.1

    root = jax.random.PRNGKey(0)
    k_ids, k_tok, k_drop = jax.random.split(root, 3)

    ids = jax.random.randint(k_ids, (batch, seq_len), 0, vocab_size, dtype=jnp.int32)
    tok_table = (0.02 * jax.random.normal(k_tok, (vocab_size, d_model))).astype(jnp.float32)
    pos_enc = sinusoidal_pos_encoding(maxlen, d_model)[:seq_len]

    ref = tok_table[ids] + pos_enc[None, :, :]

    # Inference path (dropout compiled out): must match the reference.
    out_eval = jax.block_until_ready(total_embedding(ids, tok_table, pos_enc, 0.0))
    assert out_eval.shape == (batch, seq_len, d_model)
    assert bool(jnp.allclose(out_eval, ref, atol=1e-4, rtol=1e-4))

    # Training path (dropout): kept elements equal ref / (1 - p), rest are 0.
    out_train = jax.block_until_ready(
        total_embedding(ids, tok_table, pos_enc, drop_prob, dropout_key=k_drop))
    assert out_train.shape == (batch, seq_len, d_model)
    assert bool(jnp.all(jnp.isfinite(out_train)))
    kept = out_train != 0.0
    scaled_ref = ref / (1.0 - drop_prob)
    assert bool(jnp.allclose(jnp.where(kept, out_train, 0.0),
                             jnp.where(kept, scaled_ref, 0.0),
                             atol=1e-4, rtol=1e-4))

    print("KERNEL_OK")
</pallas_src>

<mosaic_0001>
module attributes {stable_mosaic.version = 11 : i64} {
  func.func @_total_embedding_kernel(%arg0: i32, %arg1: memref<16x1xi32, #tpu.memory_space<vmem>>, %arg2: memref<16x1xi32, #tpu.memory_space<vmem>>, %arg3: memref<128x128xf32, #tpu.memory_space<vmem>>, %arg4: memref<16x128xf32, #tpu.memory_space<vmem>>) attributes {dimension_semantics = [#tpu.dimension_semantics<parallel>], iteration_bounds = array<i64: 1>, scalar_prefetch = 0 : i64, scratch_operands = 0 : i64, tpu.core_type = #tpu.core_type<tc>, window_params = [{transform_indices = @transform_0, window_bounds = array<i64: 16, 1>}, {transform_indices = @transform_1, window_bounds = array<i64: 16, 1>}, {pipeline_mode = #tpu.pipeline_mode<synchronous>, transform_indices = @transform_2, window_bounds = array<i64: 128, 128>}, {transform_indices = @transform_3, window_bounds = array<i64: 16, 128>}]} {
    %0 = tpu.iota {dimensions = array<i32: 1>} : vector<16x128xi32>
    %c0 = arith.constant 0 : index
    %c0_0 = arith.constant 0 : index
    %1 = vector.load %arg1[%c0, %c0_0] : memref<16x1xi32, #tpu.memory_space<vmem>>, vector<16x1xi32>
    %2 = vector.broadcast %1 : vector<16x1xi32> to vector<16x128xi32>
    %3 = arith.cmpi eq, %0, %2 : vector<16x128xi32>
    %c0_1 = arith.constant 0 : index
    %c0_2 = arith.constant 0 : index
    %4 = vector.load %arg2[%c0_1, %c0_2] : memref<16x1xi32, #tpu.memory_space<vmem>>, vector<16x1xi32>
    %5 = vector.broadcast %4 : vector<16x1xi32> to vector<16x128xi32>
    %6 = arith.cmpi eq, %0, %5 : vector<16x128xi32>
    %7 = arith.ori %3, %6 : vector<16x128xi1>
    %8 = arith.extui %7 : vector<16x128xi1> to vector<16x128xi32>
    %9 = arith.sitofp %8 : vector<16x128xi32> to vector<16x128xf32>
    %c0_3 = arith.constant 0 : index
    %c0_4 = arith.constant 0 : index
    %10 = vector.load %arg3[%c0_3, %c0_4] : memref<128x128xf32, #tpu.memory_space<vmem>>, vector<128x128xf32>
    %cst = arith.constant dense<0.000000e+00> : vector<16x128xf32>
    %11 = tpu.matmul %9, %10, %cst {dimension_numbers = #tpu.dot_dimension_numbers<[1], [0], [0], [1], [0, 0, 1, 1], [], []>, precision = #tpu.contract_precision<fp32>} : vector<16x128xf32>, vector<128x128xf32>, vector<16x128xf32> -> vector<16x128xf32>
    %c0_5 = arith.constant 0 : index
    %c0_6 = arith.constant 0 : index
    %12 = vector.load %arg4[%c0_5, %c0_6] : memref<16x128xf32, #tpu.memory_space<vmem>>, vector<16x128xf32>
    tpu.vector_store %arg4[%c0_5, %c0_6], %11 {strides = array<i32>} : memref<16x128xf32, #tpu.memory_space<vmem>>, vector<16x128xf32>,
    return
  }
  func.func @transform_0(%arg0: i32) -> (i32, i32) {
    %c0_i32 = arith.constant 0 : i32
    %c0_i32_0 = arith.constant 0 : i32
    return %arg0, %c0_i32 : i32, i32
  }
  func.func @transform_1(%arg0: i32) -> (i32, i32) {
    %c0_i32 = arith.constant 0 : i32
    %c0_i32_0 = arith.constant 0 : i32
    return %arg0, %c0_i32 : i32, i32
  }
  func.func @transform_2(%arg0: i32) -> (i32, i32) {
    %c0_i32 = arith.constant 0 : i32
    %c0_i32_0 = arith.constant 0 : i32
    %c0_i32_1 = arith.constant 0 : i32
    return %c0_i32, %c0_i32_0 : i32, i32
  }
  func.func @transform_3(%arg0: i32) -> (i32, i32) {
    %c0_i32 = arith.constant 0 : i32
    %c0_i32_0 = arith.constant 0 : i32
    return %arg0, %c0_i32 : i32, i32
  }
}

</mosaic_0001>

<llo_original>
// kernel: tpu_custom_call.1
$region0: #{tpu_custom_call.1}
  #allocation0 [shape = 'u32[]', space=smem, size = 0x4, offset = 0x4, fixed_abs, tag = 'smem constant byte address 0x4 - core index']
  #allocation1 [shape = 'u32[144,128]{1,0:T(1,128)}', space=vmem, size = 0x12000, scoped, tag = 'internal scratch']
  %s0 = inlined_call_operand.vmem [shape: s32[16,1], index: 0, kind: input, shape index: {}]
  %s1 = inlined_call_operand.vmem [shape: s32[16,1], index: 1, kind: input, shape index: {}]
  %s2 = inlined_call_operand.hbm [shape: f32[128,128], index: 2, kind: input, shape index: {}]
  %s3 = inlined_call_operand.hbm [shape: f32[16,128], index: 3, kind: output, shape index: {}]
  %s4 = sld [smem:[#allocation0]]
  $region26: #{tpu_custom_call.1} parent=0
    _
  %s6 = ssub.s32 1, %s4
  %s7 = scalar_select 0, %s6, %s4
  $region1: #{tpu_custom_call.1} parent=0
    #allocation2 [shape = 'u8[65536]{0}', space=vmem, size = 0x10000, scoped, tag = 'input window, operand 2, single buffered']
    #allocation3 [shape = 's32[1]{0}', space=sflag, size = 0x4, scoped, tag = 'scoped memory for tpu_custom_call.1']
    #allocation4 [shape = 's32[1]{0}', space=sflag, size = 0x4, scoped, tag = 'scoped memory for tpu_custom_call.1']
    #allocation5 [shape = 'u8[8192]{0}', space=vmem, size = 0x2000, scoped, tag = 'output window, operand 0, single buffered']
    %8 = vsyncpa [#allocation3], 0
    %9 = vsyncpa [#allocation4], 0
    // Predicated region
    $region2: #{tpu_custom_call.1} parent=1 // pred_check
      _
    $region3: #{tpu_custom_call.1} parent=1 // pred_check_branch
      %11 = sbr.rel (0) target = $region5
    $region4: #{tpu_custom_call.1} parent=1 // pred_region
      _
    $region5: #{tpu_custom_call.1} parent=1 // pred_fallthru
      _
    // Predicated region
    $region6: #{tpu_custom_call.1} parent=1 // pred_check
      _
    $region7: #{tpu_custom_call.1} parent=1 // pred_check_branch
      %13 = sbr.rel (0) target = $region9
    $region8: #{tpu_custom_call.1} parent=1 // pred_region
      _
    $region9: #{tpu_custom_call.1} parent=1 // pred_fallthru
      _
    // Predicated region
    $region10: #{tpu_custom_call.1} parent=1 // pred_check
      _
    $region11: #{tpu_custom_call.1} parent=1 // pred_check_branch
      %15 = sbr.rel (0) target = $region13
    $region12: #{tpu_custom_call.1} parent=1 // pred_region
      %s17 = ssub.s32 2048, 2048
      %18 = vsyncadd [#allocation3], %s17
      %s19 = sshll.u32 [#allocation2], 4
      %s20 = int_to_ptr.vmem [resolvable:$true] %s19
      %25 = dma.hbm_to_vmem [thread:$0]  %s2, 2048, %s20, [#allocation3], 128, 128, 8
    $region13: #{tpu_custom_call.1} parent=1 // pred_fallthru
      _
    // Predicated region
    $region14: #{tpu_custom_call.1} parent=1 // pred_check
      _
    $region15: #{tpu_custom_call.1} parent=1 // pred_check_branch
      %27 = sbr.rel (0) target = $region17
    $region16: #{tpu_custom_call.1} parent=1 // pred_region
      %28 = dma.done [#allocation3], 2048
    $region17: #{tpu_custom_call.1} parent=1 // pred_fallthru
      _
    %v29 = vlaneseq
    %v30 = vand.u32 %v29, 127
    %v31 = vld [vmem:[%s0] sm:$0xff]
    %v32 = vld [vmem:[%s0 + $0x8] sm:$0xff]
    %33 = vset.pattern.permute.xlu0 0
    %34 = vperm.xlu0 %33, %v31
    %v35 = vpop.permute.xlu0 %34
    %36 = vset.pattern.permute.xlu0 0
    %37 = vperm.xlu0 %36, %v32
    %v38 = vpop.permute.xlu0 %37
    %vm39 = vcmp.eq.s32.totalorder %v30, %v35
    %vm40 = vcmp.eq.s32.totalorder %v30, %v38
    %v41 = vld [vmem:[%s1] sm:$0xff]
    %v42 = vld [vmem:[%s1 + $0x8] sm:$0xff]
    %43 = vset.pattern.permute.xlu0 0
    %44 = vperm.xlu0 %43, %v41
    %v45 = vpop.permute.xlu0 %44
    %46 = vset.pattern.permute.xlu0 0
    %47 = vperm.xlu0 %46, %v42
    %v48 = vpop.permute.xlu0 %47
    %vm49 = vcmp.eq.s32.totalorder %v30, %v45
    %vm50 = vcmp.eq.s32.totalorder %v30, %v48
    %vm51 = vmor %vm39, %vm49
    %vm52 = vmor %vm40, %vm50
    %v53 = vsel %vm51, 1, 0
    %v54 = vsel %vm52, 1, 0
    %v55 = vcvt.s32.f32 %v53
    %v56 = vcvt.s32.f32 %v54
    %v57 = vld [vmem:[#allocation2] sm:$0xff]
    %v58 = vld [vmem:[#allocation2 + $0x8] sm:$0xff]
    %v59 = vld [vmem:[#allocation2 + $0x10] sm:$0xff]
    %v60 = vld [vmem:[#allocation2 + $0x18] sm:$0xff]
    %v61 = vld [vmem:[#allocation2 + $0x20] sm:$0xff]
    %v62 = vld [vmem:[#allocation2 + $0x28] sm:$0xff]
    %v63 = vld [vmem:[#allocation2 + $0x30] sm:$0xff]
    %v64 = vld [vmem:[#allocation2 + $0x38] sm:$0xff]
    %v65 = vld [vmem:[#allocation2 + $0x40] sm:$0xff]
    %v66 = vld [vmem:[#allocation2 + $0x48] sm:$0xff]
    %v67 = vld [vmem:[#allocation2 + $0x50] sm:$0xff]
    %v68 = vld [vmem:[#allocation2 + $0x58] sm:$0xff]
    %v69 = vld [vmem:[#allocation2 + $0x60] sm:$0xff]
    %v70 = vld [vmem:[#allocation2 + $0x68] sm:$0xff]
    %v71 = vld [vmem:[#allocation2 + $0x70] sm:$0xff]
    %v72 = vld [vmem:[#allocation2 + $0x78] sm:$0xff]
    %73 = vmatprep.subr.mxu0 0.0
    %v74 = vand.u32 %v57, 4294901760
    %75 = vmatpush1.msra.mxu0 %v74
    %76 = vmatprep.subr.mxu0 0.0
    %v77 = vand.u32 %v58, 4294901760
    %78 = vmatpush1.msra.mxu0 %v77
    %79 = vmatprep.subr.mxu0 0.0
    %v80 = vand.u32 %v59, 4294901760
    %81 = vmatpush1.msra.mxu0 %v80
    %82 = vmatprep.subr.mxu0 0.0
    %v83 = vand.u32 %v60, 4294901760
    %84 = vmatpush1.msra.mxu0 %v83
    %85 = vmatprep.subr.mxu0 0.0
    %v86 = vand.u32 %v61, 4294901760
    %87 = vmatpush1.msra.mxu0 %v86
    %88 = vmatprep.subr.mxu0 0.0
    %v89 = vand.u32 %v62, 4294901760
    %90 = vmatpush1.msra.mxu0 %v89
    %91 = vmatprep.subr.mxu0 0.0
    %v92 = vand.u32 %v63, 4294901760
    %93 = vmatpush1.msra.mxu0 %v92
    %94 = vmatprep.subr.mxu0 0.0
    %v95 = vand.u32 %v64, 4294901760
    %96 = vmatpush1.msra.mxu0 %v95
    %97 = vmatprep.subr.mxu0 0.0
    %v98 = vand.u32 %v65, 4294901760
    %99 = vmatpush1.msra.mxu0 %v98
    %100 = vmatprep.subr.mxu0 0.0
    %v101 = vand.u32 %v66, 4294901760
    %102 = vmatpush1.msra.mxu0 %v101
    %103 = vmatprep.subr.mxu0 0.0
    %v104 = vand.u32 %v67, 4294901760
    %105 = vmatpush1.msra.mxu0 %v104
    %106 = vmatprep.subr.mxu0 0.0
    %v107 = vand.u32 %v68, 4294901760
    %108 = vmatpush1.msra.mxu0 %v107
    %109 = vmatprep.subr.mxu0 0.0
    %v110 = vand.u32 %v69, 4294901760
    %111 = vmatpush1.msra.mxu0 %v110
    %112 = vmatprep.subr.mxu0 0.0
    %v113 = vand.u32 %v70, 4294901760
    %114 = vmatpush1.msra.mxu0 %v113
    %115 = vmatprep.subr.mxu0 0.0
    %v116 = vand.u32 %v71, 4294901760
    %117 = vmatpush1.msra.mxu0 %v116
    %118 = vmatprep.subr.mxu0 0.0
    %v119 = vand.u32 %v72, 4294901760
    %120 = vmatpush1.msra.mxu0 %v119
    %121 = vmatprep.subr.mxu0 0.0
    %122 = vmatpush1.msra.mxu0 0.0
    %123 = vmatprep.subr.mxu0 0.0
    %124 = vmatpush1.msra.mxu0 0.0
    %125 = vmatprep.subr.mxu0 0.0
    %126 = vmatpush1.msra.mxu0 0.0
    %127 = vmatprep.subr.mxu0 0.0
    %128 = vmatpush1.msra.mxu0 0.0
    %129 = vmatprep.subr.mxu0 0.0
    %130 = vmatpush1.msra.mxu0 0.0
    %131 = vmatprep.subr.mxu0 0.0
    %132 = vmatpush1.msra.mxu0 0.0
    %133 = vmatprep.subr.mxu0 0.0
    %134 = vmatpush1.msra.mxu0 0.0
    %135 = vmatprep.subr.mxu0 0.0
    %136 = vmatpush1.msra.mxu0 0.0
    %137 = vmatprep.subr.mxu0 0.0
    %138 = vmatpush1.msra.mxu0 0.0
    %139 = vmatprep.subr.mxu0 0.0
    %140 = vmatpush1.msra.mxu0 0.0
    %141 = vmatprep.subr.mxu0 0.0
    %142 = vmatpush1.msra.mxu0 0.0
    %143 = vmatprep.subr.mxu0 0.0
    %144 = vmatpush1.msra.mxu0 0.0
    %145 = vmatprep.subr.mxu0 0.0
    %146 = vmatpush1.msra.mxu0 0.0
    %147 = vmatprep.subr.mxu0 0.0
    %148 = vmatpush1.msra.mxu0 0.0
    %149 = vmatprep.subr.mxu0 0.0
    %150 = vmatpush1.msra.mxu0 0.0
    %151 = vmatprep.subr.mxu0 0.0
    %152 = vmatpush1.msra.mxu0 0.0
    %153 = vmatprep.mubr.f32.mxu0 0.0
    %v154 = vand.u32 %v55, 4294901760
    %v155 = vsub.f32 %v55, %v154
    %v156 = vand.u32 %v155, 4294901760
    %v157 = vsub.f32 %v155, %v156
    %v158 = vand.u32 %v157, 4294901760
    %159 = vmatmul.mubr.f32.gmra.mrb[0].mxu0 %v158
    %v160 = vpop.f32.mrb[0].mxu0
    %v161 = vadd.f32 0.0, %v160
    %v162 = vpop.f32.mrb[0].mxu0
    %163 = vmatprep.mubr.f32.mxu0 0.0
    %v164 = vand.u32 %v56, 4294901760
    %v165 = vsub.f32 %v56, %v164
    %v166 = vand.u32 %v165, 4294901760
    %v167 = vsub.f32 %v165, %v166
    %v168 = vand.u32 %v167, 4294901760
    %169 = vmatmul.mubr.f32.gmra.mrb[0].mxu0 %v168
    %v170 = vpop.f32.mrb[0].mxu0
    %v171 = vadd.f32 0.0, %v170
    %v172 = vpop.f32.mrb[0].mxu0
    %173 = vdwg.mxu0
    %174 = vmatprep.subr.mxu0 0.0
    %v175 = vand.u32 %v57, 4294901760
    %v176 = vsub.f32 %v57, %v175
    %v177 = vand.u32 %v176, 4294901760
    %v178 = vsub.f32 %v176, %v177
    %v179 = vand.u32 %v178, 4294901760
    %180 = vmatpush1.msra.mxu0 %v179
    %181 = vmatprep.subr.mxu0 0.0
    %v182 = vand.u32 %v58, 4294901760
    %v183 = vsub.f32 %v58, %v182
    %v184 = vand.u32 %v183, 4294901760
    %v185 = vsub.f32 %v183, %v184
    %v186 = vand.u32 %v185, 4294901760
    %187 = vmatpush1.msra.mxu0 %v186
    %188 = vmatprep.subr.mxu0 0.0
    %v189 = vand.u32 %v59, 4294901760
    %v190 = vsub.f32 %v59, %v189
    %v191 = vand.u32 %v190, 4294901760
    %v192 = vsub.f32 %v190, %v191
    %v193 = vand.u32 %v192, 4294901760
    %194 = vmatpush1.msra.mxu0 %v193
    %195 = vmatprep.subr.mxu0 0.0
    %v196 = vand.u32 %v60, 4294901760
    %v197 = vsub.f32 %v60, %v196
    %v198 = vand.u32 %v197, 4294901760
    %v199 = vsub.f32 %v197, %v198
    %v200 = vand.u32 %v199, 4294901760
    %201 = vmatpush1.msra.mxu0 %v200
    %202 = vmatprep.subr.mxu0 0.0
    %v203 = vand.u32 %v61, 4294901760
    %v204 = vsub.f32 %v61, %v203
    %v205 = vand.u32 %v204, 4294901760
    %v206 = vsub.f32 %v204, %v205
    %v207 = vand.u32 %v206, 4294901760
    %208 = vmatpush1.msra.mxu0 %v207
    %209 = vmatprep.subr.mxu0 0.0
    %v210 = vand.u32 %v62, 4294901760
    %v211 = vsub.f32 %v62, %v210
    %v212 = vand.u32 %v211, 4294901760
    %v213 = vsub.f32 %v211, %v212
    %v214 = vand.u32 %v213, 4294901760
    %215 = vmatpush1.msra.mxu0 %v214
    %216 = vmatprep.subr.mxu0 0.0
    %v217 = vand.u32 %v63, 4294901760
    %v218 = vsub.f32 %v63, %v217
    %v219 = vand.u32 %v218, 4294901760
    %v220 = vsub.f32 %v218, %v219
    %v221 = vand.u32 %v220, 4294901760
    %222 = vmatpush1.msra.mxu0 %v221
    %223 = vmatprep.subr.mxu0 0.0
    %v224 = vand.u32 %v64, 4294901760
    %v225 = vsub.f32 %v64, %v224
    %v226 = vand.u32 %v225, 4294901760
    %v227 = vsub.f32 %v225, %v226
    %v228 = vand.u32 %v227, 4294901760
    %229 = vmatpush1.msra.mxu0 %v228
    %230 = vmatprep.subr.mxu0 0.0
    %v231 = vand.u32 %v65, 4294901760
    %v232 = vsub.f32 %v65, %v231
    %v233 = vand.u32 %v232, 4294901760
    %v234 = vsub.f32 %v232, %v233
    %v235 = vand.u32 %v234, 4294901760
    %236 = vmatpush1.msra.mxu0 %v235
    %237 = vmatprep.subr.mxu0 0.0
    %v238 = vand.u32 %v66, 4294901760
    %v239 = vsub.f32 %v66, %v238
    %v240 = vand.u32 %v239, 4294901760
    %v241 = vsub.f32 %v239, %v240
    %v242 = vand.u32 %v241, 4294901760
    %243 = vmatpush1.msra.mxu0 %v242
    %244 = vmatprep.subr.mxu0 0.0
    %v245 = vand.u32 %v67, 4294901760
    %v246 = vsub.f32 %v67, %v245
    %v247 = vand.u32 %v246, 4294901760
    %v248 = vsub.f32 %v246, %v247
    %v249 = vand.u32 %v248, 4294901760
    %250 = vmatpush1.msra.mxu0 %v249
    %251 = vmatprep.subr.mxu0 0.0
    %v252 = vand.u32 %v68, 4294901760
    %v253 = vsub.f32 %v68, %v252
    %v254 = vand.u32 %v253, 4294901760
    %v255 = vsub.f32 %v253, %v254
    %v256 = vand.u32 %v255, 4294901760
    %257 = vmatpush1.msra.mxu0 %v256
    %258 = vmatprep.subr.mxu0 0.0
    %v259 = vand.u32 %v69, 4294901760
    %v260 = vsub.f32 %v69, %v259
    %v261 = vand.u32 %v260, 4294901760
    %v262 = vsub.f32 %v260, %v261
    %v263 = vand.u32 %v262, 4294901760
    %264 = vmatpush1.msra.mxu0 %v263
    %265 = vmatprep.subr.mxu0 0.0
    %v266 = vand.u32 %v70, 4294901760
    %v267 = vsub.f32 %v70, %v266
    %v268 = vand.u32 %v267, 4294901760
    %v269 = vsub.f32 %v267, %v268
    %v270 = vand.u32 %v269, 4294901760
    %271 = vmatpush1.msra.mxu0 %v270
    %272 = vmatprep.subr.mxu0 0.0
    %v273 = vand.u32 %v71, 4294901760
    %v274 = vsub.f32 %v71, %v273
    %v275 = vand.u32 %v274, 4294901760
    %v276 = vsub.f32 %v274, %v275
    %v277 = vand.u32 %v276, 4294901760
    %278 = vmatpush1.msra.mxu0 %v277
    %279 = vmatprep.subr.mxu0 0.0
    %v280 = vand.u32 %v72, 4294901760
    %v281 = vsub.f32 %v72, %v280
    %v282 = vand.u32 %v281, 4294901760
    %v283 = vsub.f32 %v281, %v282
    %v284 = vand.u32 %v283, 4294901760
    %285 = vmatpush1.msra.mxu0 %v284
    %286 = vmatprep.subr.mxu0 0.0
    %287 = vmatpush1.msra.mxu0 0.0
    %288 = vmatprep.subr.mxu0 0.0
    %289 = vmatpush1.msra.mxu0 0.0
    %290 = vmatprep.subr.mxu0 0.0
    %291 = vmatpush1.msra.mxu0 0.0
    %292 = vmatprep.subr.mxu0 0.0
    %293 = vmatpush1.msra.mxu0 0.0
    %294 = vmatprep.subr.mxu0 0.0
    %295 = vmatpush1.msra.mxu0 0.0
    %296 = vmatprep.subr.mxu0 0.0
    %297 = vmatpush1.msra.mxu0 0.0
    %298 = vmatprep.subr.mxu0 0.0
    %299 = vmatpush1.msra.mxu0 0.0
    %300 = vmatprep.subr.mxu0 0.0
    %301 = vmatpush1.msra.mxu0 0.0
    %302 = vmatprep.subr.mxu0 0.0
    %303 = vmatpush1.msra.mxu0 0.0
    %304 = vmatprep.subr.mxu0 0.0
    %305 = vmatpush1.msra.mxu0 0.0
    %306 = vmatprep.subr.mxu0 0.0
    %307 = vmatpush1.msra.mxu0 0.0
    %308 = vmatprep.subr.mxu0 0.0
    %309 = vmatpush1.msra.mxu0 0.0
    %310 = vmatprep.subr.mxu0 0.0
    %311 = vmatpush1.msra.mxu0 0.0
    %312 = vmatprep.subr.mxu0 0.0
    %313 = vmatpush1.msra.mxu0 0.0
    %314 = vmatprep.subr.mxu0 0.0
    %315 = vmatpush1.msra.mxu0 0.0
    %316 = vmatprep.subr.mxu0 0.0
    %317 = vmatpush1.msra.mxu0 0.0
    %318 = vmatprep.mubr.f32.mxu0 0.0
    %v319 = vand.u32 %v55, 4294901760
    %320 = vmatmul.mubr.f32.gmra.mrb[0].mxu0 %v319
    %v321 = vpop.f32.mrb[0].mxu0
    %v322 = vadd.f32 %v161, %v321
    %v323 = vpop.f32.mrb[0].mxu0
    %324 = vmatprep.mubr.f32.mxu0 0.0
    %v325 = vand.u32 %v56, 4294901760
    %326 = vmatmul.mubr.f32.gmra.mrb[0].mxu0 %v325
    %v327 = vpop.f32.mrb[0].mxu0
    %v328 = vadd.f32 %v171, %v327
    %v329 = vpop.f32.mrb[0].mxu0
    %330 = vdwg.mxu0
    %331 = vmatprep.subr.mxu0 0.0
    %v332 = vand.u32 %v57, 4294901760
    %v333 = vsub.f32 %v57, %v332
    %334 = vmatpush1.msra.mxu0 %v333
    %335 = vmatprep.subr.mxu0 0.0
    %v336 = vand.u32 %v58, 4294901760
    %v337 = vsub.f32 %v58, %v336
    %338 = vmatpush1.msra.mxu0 %v337
    %339 = vmatprep.subr.mxu0 0.0
    %v340 = vand.u32 %v59, 4294901760
    %v341 = vsub.f32 %v59, %v340
    %342 = vmatpush1.msra.mxu0 %v341
    %343 = vmatprep.subr.mxu0 0.0
    %v344 = vand.u32 %v60, 4294901760
    %v345 = vsub.f32 %v60, %v344
    %346 = vmatpush1.msra.mxu0 %v345
    %347 = vmatprep.subr.mxu0 0.0
    %v348 = vand.u32 %v61, 4294901760
    %v349 = vsub.f32 %v61, %v348
    %350 = vmatpush1.msra.mxu0 %v349
    %351 = vmatprep.subr.mxu0 0.0
    %v352 = vand.u32 %v62, 4294901760
    %v353 = vsub.f32 %v62, %v352
    %354 = vmatpush1.msra.mxu0 %v353
    %355 = vmatprep.subr.mxu0 0.0
    %v356 = vand.u32 %v63, 4294901760
    %v357 = vsub.f32 %v63, %v356
    %358 = vmatpush1.msra.mxu0 %v357
    %359 = vmatprep.subr.mxu0 0.0
    %v360 = vand.u32 %v64, 4294901760
    %v361 = vsub.f32 %v64, %v360
    %362 = vmatpush1.msra.mxu0 %v361
    %363 = vmatprep.subr.mxu0 0.0
    %v364 = vand.u32 %v65, 4294901760
    %v365 = vsub.f32 %v65, %v364
    %366 = vmatpush1.msra.mxu0 %v365
    %367 = vmatprep.subr.mxu0 0.0
    %v368 = vand.u32 %v66, 4294901760
    %v369 = vsub.f32 %v66, %v368
    %370 = vmatpush1.msra.mxu0 %v369
    %371 = vmatprep.subr.mxu0 0.0
    %v372 = vand.u32 %v67, 4294901760
    %v373 = vsub.f32 %v67, %v372
    %374 = vmatpush1.msra.mxu0 %v373
    %375 = vmatprep.subr.mxu0 0.0
    %v376 = vand.u32 %v68, 4294901760
    %v377 = vsub.f32 %v68, %v376
    %378 = vmatpush1.msra.mxu0 %v377
    %379 = vmatprep.subr.mxu0 0.0
    %v380 = vand.u32 %v69, 4294901760
    %v381 = vsub.f32 %v69, %v380
    %382 = vmatpush1.msra.mxu0 %v381
    %383 = vmatprep.subr.mxu0 0.0
    %v384 = vand.u32 %v70, 4294901760
    %v385 = vsub.f32 %v70, %v384
    %386 = vmatpush1.msra.mxu0 %v385
    %387 = vmatprep.subr.mxu0 0.0
    %v388 = vand.u32 %v71, 4294901760
    %v389 = vsub.f32 %v71, %v388
    %390 = vmatpush1.msra.mxu0 %v389
    %391 = vmatprep.subr.mxu0 0.0
    %v392 = vand.u32 %v72, 4294901760
    %v393 = vsub.f32 %v72, %v392
    %394 = vmatpush1.msra.mxu0 %v393
    %395 = vmatprep.subr.mxu0 0.0
    %396 = vmatpush1.msra.mxu0 0.0
    %397 = vmatprep.subr.mxu0 0.0
    %398 = vmatpush1.msra.mxu0 0.0
    %399 = vmatprep.subr.mxu0 0.0
    %400 = vmatpush1.msra.mxu0 0.0
    %401 = vmatprep.subr.mxu0 0.0
    %402 = vmatpush1.msra.mxu0 0.0
    %403 = vmatprep.subr.mxu0 0.0
    %404 = vmatpush1.msra.mxu0 0.0
    %405 = vmatprep.subr.mxu0 0.0
    %406 = vmatpush1.msra.mxu0 0.0
    %407 = vmatprep.subr.mxu0 0.0
    %408 = vmatpush1.msra.mxu0 0.0
    %409 = vmatprep.subr.mxu0 0.0
    %410 = vmatpush1.msra.mxu0 0.0
    %411 = vmatprep.subr.mxu0 0.0
    %412 = vmatpush1.msra.mxu0 0.0
    %413 = vmatprep.subr.mxu0 0.0
    %414 = vmatpush1.msra.mxu0 0.0
    %415 = vmatprep.subr.mxu0 0.0
    %416 = vmatpush1.msra.mxu0 0.0
    %417 = vmatprep.subr.mxu0 0.0
    %418 = vmatpush1.msra.mxu0 0.0
    %419 = vmatprep.subr.mxu0 0.0
    %420 = vmatpush1.msra.mxu0 0.0
    %421 = vmatprep.subr.mxu0 0.0
    %422 = vmatpush1.msra.mxu0 0.0
    %423 = vmatprep.subr.mxu0 0.0
    %424 = vmatpush1.msra.mxu0 0.0
    %425 = vmatprep.subr.mxu0 0.0
    %426 = vmatpush1.msra.mxu0 0.0
    %427 = vmatprep.mubr.f32.mxu0 0.0
    %v428 = vand.u32 %v55, 4294901760
    %v429 = vsub.f32 %v55, %v428
    %430 = vmatmul.mubr.f32.gmra.mrb[0].mxu0 %v429
    %v431 = vpop.f32.mrb[0].mxu0
    %v432 = vadd.f32 %v322, %v431
    %v433 = vpop.f32.mrb[0].mxu0
    %434 = vmatprep.mubr.f32.mxu0 0.0
    %v435 = vand.u32 %v56, 4294901760
    %v436 = vsub.f32 %v56, %v435
    %437 = vmatmul.mubr.f32.gmra.mrb[0].mxu0 %v436
    %v438 = vpop.f32.mrb[0].mxu0
    %v439 = vadd.f32 %v328, %v438
    %v440 = vpop.f32.mrb[0].mxu0
    %441 = vdwg.mxu0
    %442 = vmatprep.subr.mxu0 0.0
    %v443 = vand.u32 %v57, 4294901760
    %444 = vmatpush1.msra.mxu0 %v443
    %445 = vmatprep.subr.mxu0 0.0
    %v446 = vand.u32 %v58, 4294901760
    %447 = vmatpush1.msra.mxu0 %v446
    %448 = vmatprep.subr.mxu0 0.0
    %v449 = vand.u32 %v59, 4294901760
    %450 = vmatpush1.msra.mxu0 %v449
    %451 = vmatprep.subr.mxu0 0.0
    %v452 = vand.u32 %v60, 4294901760
    %453 = vmatpush1.msra.mxu0 %v452
    %454 = vmatprep.subr.mxu0 0.0
    %v455 = vand.u32 %v61, 4294901760
    %456 = vmatpush1.msra.mxu0 %v455
    %457 = vmatprep.subr.mxu0 0.0
    %v458 = vand.u32 %v62, 4294901760
    %459 = vmatpush1.msra.mxu0 %v458
    %460 = vmatprep.subr.mxu0 0.0
    %v461 = vand.u32 %v63, 4294901760
    %462 = vmatpush1.msra.mxu0 %v461
    %463 = vmatprep.subr.mxu0 0.0
    %v464 = vand.u32 %v64, 4294901760
    %465 = vmatpush1.msra.mxu0 %v464
    %466 = vmatprep.subr.mxu0 0.0
    %v467 = vand.u32 %v65, 4294901760
    %468 = vmatpush1.msra.mxu0 %v467
    %469 = vmatprep.subr.mxu0 0.0
    %v470 = vand.u32 %v66, 4294901760
    %471 = vmatpush1.msra.mxu0 %v470
    %472 = vmatprep.subr.mxu0 0.0
    %v473 = vand.u32 %v67, 4294901760
    %474 = vmatpush1.msra.mxu0 %v473
    %475 = vmatprep.subr.mxu0 0.0
    %v476 = vand.u32 %v68, 4294901760
    %477 = vmatpush1.msra.mxu0 %v476
    %478 = vmatprep.subr.mxu0 0.0
    %v479 = vand.u32 %v69, 4294901760
    %480 = vmatpush1.msra.mxu0 %v479
    %481 = vmatprep.subr.mxu0 0.0
    %v482 = vand.u32 %v70, 4294901760
    %483 = vmatpush1.msra.mxu0 %v482
    %484 = vmatprep.subr.mxu0 0.0
    %v485 = vand.u32 %v71, 4294901760
    %486 = vmatpush1.msra.mxu0 %v485
    %487 = vmatprep.subr.mxu0 0.0
    %v488 = vand.u32 %v72, 4294901760
    %489 = vmatpush1.msra.mxu0 %v488
    %490 = vmatprep.subr.mxu0 0.0
    %491 = vmatpush1.msra.mxu0 0.0
    %492 = vmatprep.subr.mxu0 0.0
    %493 = vmatpush1.msra.mxu0 0.0
    %494 = vmatprep.subr.mxu0 0.0
    %495 = vmatpush1.msra.mxu0 0.0
    %496 = vmatprep.subr.mxu0 0.0
    %497 = vmatpush1.msra.mxu0 0.0
    %498 = vmatprep.subr.mxu0 0.0
    %499 = vmatpush1.msra.mxu0 0.0
    %500 = vmatprep.subr.mxu0 0.0
    %501 = vmatpush1.msra.mxu0 0.0
    %502 = vmatprep.subr.mxu0 0.0
    %503 = vmatpush1.msra.mxu0 0.0
    %504 = vmatprep.subr.mxu0 0.0
    %505 = vmatpush1.msra.mxu0 0.0
    %506 = vmatprep.subr.mxu0 0.0
    %507 = vmatpush1.msra.mxu0 0.0
    %508 = vmatprep.subr.mxu0 0.0
    %509 = vmatpush1.msra.mxu0 0.0
    %510 = vmatprep.subr.mxu0 0.0
    %511 = vmatpush1.msra.mxu0 0.0
    %512 = vmatprep.subr.mxu0 0.0
    %513 = vmatpush1.msra.mxu0 0.0
    %514 = vmatprep.subr.mxu0 0.0
    %515 = vmatpush1.msra.mxu0 0.0
    %516 = vmatprep.subr.mxu0 0.0
    %517 = vmatpush1.msra.mxu0 0.0
    %518 = vmatprep.subr.mxu0 0.0
    %519 = vmatpush1.msra.mxu0 0.0
    %520 = vmatprep.subr.mxu0 0.0
    %521 = vmatpush1.msra.mxu0 0.0
    %522 = vmatprep.mubr.f32.mxu0 0.0
    %v523 = vand.u32 %v55, 4294901760
    %v524 = vsub.f32 %v55, %v523
    %v525 = vand.u32 %v524, 4294901760
    %526 = vmatmul.mubr.f32.gmra.mrb[0].mxu0 %v525
    %v527 = vpop.f32.mrb[0].mxu0
    %v528 = vadd.f32 %v432, %v527
    %v529 = vpop.f32.mrb[0].mxu0
    %530 = vmatprep.mubr.f32.mxu0 0.0
    %v531 = vand.u32 %v56, 4294901760
    %v532 = vsub.f32 %v56, %v531
    %v533 = vand.u32 %v532, 4294901760
    %534 = vmatmul.mubr.f32.gmra.mrb[0].mxu0 %v533
    %v535 = vpop.f32.mrb[0].mxu0
    %v536 = vadd.f32 %v439, %v535
    %v537 = vpop.f32.mrb[0].mxu0
    %538 = vdwg.mxu0
    %539 = vmatprep.subr.mxu0 0.0
    %v540 = vand.u32 %v57, 4294901760
    %v541 = vsub.f32 %v57, %v540
    %v542 = vand.u32 %v541, 4294901760
    %543 = vmatpush1.msra.mxu0 %v542
    %544 = vmatprep.subr.mxu0 0.0
    %v545 = vand.u32 %v58, 4294901760
    %v546 = vsub.f32 %v58, %v545
    %v547 = vand.u32 %v546, 4294901760
    %548 = vmatpush1.msra.mxu0 %v547
    %549 = vmatprep.subr.mxu0 0.0
    %v550 = vand.u32 %v59, 4294901760
    %v551 = vsub.f32 %v59, %v550
    %v552 = vand.u32 %v551, 4294901760
    %553 = vmatpush1.msra.mxu0 %v552
    %554 = vmatprep.subr.mxu0 0.0
    %v555 = vand.u32 %v60, 4294901760
    %v556 = vsub.f32 %v60, %v555
    %v557 = vand.u32 %v556, 4294901760
    %558 = vmatpush1.msra.mxu0 %v557
    %559 = vmatprep.subr.mxu0 0.0
    %v560 = vand.u32 %v61, 4294901760
    %v561 = vsub.f32 %v61, %v560
    %v562 = vand.u32 %v561, 4294901760
    %563 = vmatpush1.msra.mxu0 %v562
    %564 = vmatprep.subr.mxu0 0.0
    %v565 = vand.u32 %v62, 4294901760
    %v566 = vsub.f32 %v62, %v565
    %v567 = vand.u32 %v566, 4294901760
    %568 = vmatpush1.msra.mxu0 %v567
    %569 = vmatprep.subr.mxu0 0.0
    %v570 = vand.u32 %v63, 4294901760
    %v571 = vsub.f32 %v63, %v570
    %v572 = vand.u32 %v571, 4294901760
    %573 = vmatpush1.msra.mxu0 %v572
    %574 = vmatprep.subr.mxu0 0.0
    %v575 = vand.u32 %v64, 4294901760
    %v576 = vsub.f32 %v64, %v575
    %v577 = vand.u32 %v576, 4294901760
    %578 = vmatpush1.msra.mxu0 %v577
    %579 = vmatprep.subr.mxu0 0.0
    %v580 = vand.u32 %v65, 4294901760
    %v581 = vsub.f32 %v65, %v580
    %v582 = vand.u32 %v581, 4294901760
    %583 = vmatpush1.msra.mxu0 %v582
    %584 = vmatprep.subr.mxu0 0.0
    %v585 = vand.u32 %v66, 4294901760
    %v586 = vsub.f32 %v66, %v585
    %v587 = vand.u32 %v586, 4294901760
    %588 = vmatpush1.msra.mxu0 %v587
    %589 = vmatprep.subr.mxu0 0.0
    %v590 = vand.u32 %v67, 4294901760
    %v591 = vsub.f32 %v67, %v590
    %v592 = vand.u32 %v591, 4294901760
    %593 = vmatpush1.msra.mxu0 %v592
    %594 = vmatprep.subr.mxu0 0.0
    %v595 = vand.u32 %v68, 4294901760
    %v596 = vsub.f32 %v68, %v595
    %v597 = vand.u32 %v596, 4294901760
    %598 = vmatpush1.msra.mxu0 %v597
    %599 = vmatprep.subr.mxu0 0.0
    %v600 = vand.u32 %v69, 4294901760
    %v601 = vsub.f32 %v69, %v600
    %v602 = vand.u32 %v601, 4294901760
    %603 = vmatpush1.msra.mxu0 %v602
    %604 = vmatprep.subr.mxu0 0.0
    %v605 = vand.u32 %v70, 4294901760
    %v606 = vsub.f32 %v70, %v605
    %v607 = vand.u32 %v606, 4294901760
    %608 = vmatpush1.msra.mxu0 %v607
    %609 = vmatprep.subr.mxu0 0.0
    %v610 = vand.u32 %v71, 4294901760
    %v611 = vsub.f32 %v71, %v610
    %v612 = vand.u32 %v611, 4294901760
    %613 = vmatpush1.msra.mxu0 %v612
    %614 = vmatprep.subr.mxu0 0.0
    %v615 = vand.u32 %v72, 4294901760
    %v616 = vsub.f32 %v72, %v615
    %v617 = vand.u32 %v616, 4294901760
    %618 = vmatpush1.msra.mxu0 %v617
    %619 = vmatprep.subr.mxu0 0.0
    %620 = vmatpush1.msra.mxu0 0.0
    %621 = vmatprep.subr.mxu0 0.0
    %622 = vmatpush1.msra.mxu0 0.0
    %623 = vmatprep.subr.mxu0 0.0
    %624 = vmatpush1.msra.mxu0 0.0
    %625 = vmatprep.subr.mxu0 0.0
    %626 = vmatpush1.msra.mxu0 0.0
    %627 = vmatprep.subr.mxu0 0.0
    %628 = vmatpush1.msra.mxu0 0.0
    %629 = vmatprep.subr.mxu0 0.0
    %630 = vmatpush1.msra.mxu0 0.0
    %631 = vmatprep.subr.mxu0 0.0
    %632 = vmatpush1.msra.mxu0 0.0
    %633 = vmatprep.subr.mxu0 0.0
    %634 = vmatpush1.msra.mxu0 0.0
    %635 = vmatprep.subr.mxu0 0.0
    %636 = vmatpush1.msra.mxu0 0.0
    %637 = vmatprep.subr.mxu0 0.0
    %638 = vmatpush1.msra.mxu0 0.0
    %639 = vmatprep.subr.mxu0 0.0
    %640 = vmatpush1.msra.mxu0 0.0
    %641 = vmatprep.subr.mxu0 0.0
    %642 = vmatpush1.msra.mxu0 0.0
    %643 = vmatprep.subr.mxu0 0.0
    %644 = vmatpush1.msra.mxu0 0.0
    %645 = vmatprep.subr.mxu0 0.0
    %646 = vmatpush1.msra.mxu0 0.0
    %647 = vmatprep.subr.mxu0 0.0
    %648 = vmatpush1.msra.mxu0 0.0
    %649 = vmatprep.subr.mxu0 0.0
    %650 = vmatpush1.msra.mxu0 0.0
    %651 = vmatprep.mubr.f32.mxu0 0.0
    %v652 = vand.u32 %v55, 4294901760
    %653 = vmatmul.mubr.f32.gmra.mrb[0].mxu0 %v652
    %v654 = vpop.f32.mrb[0].mxu0
    %v655 = vadd.f32 %v528, %v654
    %v656 = vpop.f32.mrb[0].mxu0
    %657 = vmatprep.mubr.f32.mxu0 0.0
    %v658 = vand.u32 %v56, 4294901760
    %659 = vmatmul.mubr.f32.gmra.mrb[0].mxu0 %v658
    %v660 = vpop.f32.mrb[0].mxu0
    %v661 = vadd.f32 %v536, %v660
    %v662 = vpop.f32.mrb[0].mxu0
    %663 = vdwg.mxu0
    %664 = vmatprep.subr.mxu0 0.0
    %v665 = vand.u32 %v57, 4294901760
    %666 = vmatpush1.msra.mxu0 %v665
    %667 = vmatprep.subr.mxu0 0.0
    %v668 = vand.u32 %v58, 4294901760
    %669 = vmatpush1.msra.mxu0 %v668
    %670 = vmatprep.subr.mxu0 0.0
    %v671 = vand.u32 %v59, 4294901760
    %672 = vmatpush1.msra.mxu0 %v671
    %673 = vmatprep.subr.mxu0 0.0
    %v674 = vand.u32 %v60, 4294901760
    %675 = vmatpush1.msra.mxu0 %v674
    %676 = vmatprep.subr.mxu0 0.0
    %v677 = vand.u32 %v61, 4294901760
    %678 = vmatpush1.msra.mxu0 %v677
    %679 = vmatprep.subr.mxu0 0.0
    %v680 = vand.u32 %v62, 4294901760
    %681 = vmatpush1.msra.mxu0 %v680
    %682 = vmatprep.subr.mxu0 0.0
    %v683 = vand.u32 %v63, 4294901760
    %684 = vmatpush1.msra.mxu0 %v683
    %685 = vmatprep.subr.mxu0 0.0
    %v686 = vand.u32 %v64, 4294901760
    %687 = vmatpush1.msra.mxu0 %v686
    %688 = vmatprep.subr.mxu0 0.0
    %v689 = vand.u32 %v65, 4294901760
    %690 = vmatpush1.msra.mxu0 %v689
    %691 = vmatprep.subr.mxu0 0.0
    %v692 = vand.u32 %v66, 4294901760
    %693 = vmatpush1.msra.mxu0 %v692
    %694 = vmatprep.subr.mxu0 0.0
    %v695 = vand.u32 %v67, 4294901760
    %696 = vmatpush1.msra.mxu0 %v695
    %697 = vmatprep.subr.mxu0 0.0
    %v698 = vand.u32 %v68, 4294901760
    %699 = vmatpush1.msra.mxu0 %v698
    %700 = vmatprep.subr.mxu0 0.0
    %v701 = vand.u32 %v69, 4294901760
    %702 = vmatpush1.msra.mxu0 %v701
    %703 = vmatprep.subr.mxu0 0.0
    %v704 = vand.u32 %v70, 4294901760
    %705 = vmatpush1.msra.mxu0 %v704
    %706 = vmatprep.subr.mxu0 0.0
    %v707 = vand.u32 %v71, 4294901760
    %708 = vmatpush1.msra.mxu0 %v707
    %709 = vmatprep.subr.mxu0 0.0
    %v710 = vand.u32 %v72, 4294901760
    %711 = vmatpush1.msra.mxu0 %v710
    %712 = vmatprep.subr.mxu0 0.0
    %713 = vmatpush1.msra.mxu0 0.0
    %714 = vmatprep.subr.mxu0 0.0
    %715 = vmatpush1.msra.mxu0 0.0
    %716 = vmatprep.subr.mxu0 0.0
    %717 = vmatpush1.msra.mxu0 0.0
    %718 = vmatprep.subr.mxu0 0.0
    %719 = vmatpush1.msra.mxu0 0.0
    %720 = vmatprep.subr.mxu0 0.0
    %721 = vmatpush1.msra.mxu0 0.0
    %722 = vmatprep.subr.mxu0 0.0
    %723 = vmatpush1.msra.mxu0 0.0
    %724 = vmatprep.subr.mxu0 0.0
    %725 = vmatpush1.msra.mxu0 0.0
    %726 = vmatprep.subr.mxu0 0.0
    %727 = vmatpush1.msra.mxu0 0.0
    %728 = vmatprep.subr.mxu0 0.0
    %729 = vmatpush1.msra.mxu0 0.0
    %730 = vmatprep.subr.mxu0 0.0
    %731 = vmatpush1.msra.mxu0 0.0
    %732 = vmatprep.subr.mxu0 0.0
    %733 = vmatpush1.msra.mxu0 0.0
    %734 = vmatprep.subr.mxu0 0.0
    %735 = vmatpush1.msra.mxu0 0.0
    %736 = vmatprep.subr.mxu0 0.0
    %737 = vmatpush1.msra.mxu0 0.0
    %738 = vmatprep.subr.mxu0 0.0
    %739 = vmatpush1.msra.mxu0 0.0
    %740 = vmatprep.subr.mxu0 0.0
    %741 = vmatpush1.msra.mxu0 0.0
    %742 = vmatprep.subr.mxu0 0.0
    %743 = vmatpush1.msra.mxu0 0.0
    %744 = vmatprep.mubr.f32.mxu0 0.0
    %v745 = vand.u32 %v55, 4294901760
    %746 = vmatmul.mubr.f32.gmra.mrb[0].mxu0 %v745
    %v747 = vpop.f32.mrb[0].mxu0
    %v748 = vadd.f32 %v655, %v747
    %v749 = vpop.f32.mrb[0].mxu0
    %750 = vmatprep.mubr.f32.mxu0 0.0
    %v751 = vand.u32 %v56, 4294901760
    %752 = vmatmul.mubr.f32.gmra.mrb[0].mxu0 %v751
    %v753 = vpop.f32.mrb[0].mxu0
    %v754 = vadd.f32 %v661, %v753
    %v755 = vpop.f32.mrb[0].mxu0
    %756 = vdwg.mxu0
    %757 = vst [vmem:[#allocation5] sm:$0xff] %v748
    %758 = vst [vmem:[#allocation5 + $0x8] sm:$0xff] %v754
    // Predicated region
    $region18: #{tpu_custom_call.1} parent=1 // pred_check
      _
    $region19: #{tpu_custom_call.1} parent=1 // pred_check_branch
      %760 = sbr.rel (0) target = $region21
    $region20: #{tpu_custom_call.1} parent=1 // pred_region
      %s762 = ssub.s32 256, 256
      %763 = vsyncadd [#allocation4], %s762
      %s764 = sshll.u32 [#allocation5], 4
      %s765 = int_to_ptr.vmem [resolvable:$true] %s764
      %770 = dma.vmem_to_hbm [thread:$0]  %s765, 256, %s3, [#allocation4], 128, 128, 8
    $region21: #{tpu_custom_call.1} parent=1 // pred_fallthru
      _
    // Predicated region
    $region22: #{tpu_custom_call.1} parent=1 // pred_check
      _
    $region23: #{tpu_custom_call.1} parent=1 // pred_check_branch
      %772 = sbr.rel (0) target = $region25
    $region24: #{tpu_custom_call.1} parent=1 // pred_region
      %773 = dma.done [#allocation4], 256
    $region25: #{tpu_custom_call.1} parent=1 // pred_fallthru
      _
    %774 = vsyncpa [#allocation3], 1
    %775 = vsyncpa [#allocation4], 1

</llo_original>
